<compile_context>
chip_gen: v7x
topology: tpu7x:2x2x1
jax: 0.10.0
libtpu: 0.0.40
codegen_flags: <defaults>
</compile_context>

<pallas_src>
import math

import jax
import jax.numpy as jnp
from jax.experimental import pallas as pl
from jax.experimental.pallas import tpu as pltpu

_INV_SQRT2 = 1.0 / math.sqrt(2.0)
_LANES = 128


def _entropy_kernel(x_ref, p_ref, out_ref):
    x = x_ref[...]
    mean = p_ref[0]                       # (blk, 128)
    scale = p_ref[1]                      # (blk, 128)

    # scale[scale == 0] = 1e-9  (also catches -0.0, matching PyTorch)
    scale = jnp.where(scale == 0.0, jnp.float32(1e-9), scale)
    # Guard tiny-magnitude (subnormal-ish) scales so 1/scale stays finite;
    # likelihood is identical either way (saturated erf / clamp region).
    scale = jnp.where(
        jnp.abs(scale) < jnp.float32(1e-30),
        jnp.where(scale < 0.0, jnp.float32(-1e-30), jnp.float32(1e-30)),
        scale,
    )

    # k = 1 / (scale * sqrt(2)) via EUP approx reciprocal + one Newton step
    # (keeps the divide off the VALU critical path; ~full f32 accuracy).
    r = pl.reciprocal(scale, approx=True)
    r = r * (jnp.float32(2.0) - scale * r)
    k = r * jnp.float32(_INV_SQRT2)

    # cdf(v) = 0.5 * (1 + erf((v - mean) * k));  upper - lower collapses to:
    t = (x - mean) * k
    h = jnp.float32(0.5) * k
    like = jnp.float32(0.5) * jnp.abs(jax.lax.erf(t + h) - jax.lax.erf(t - h))

    # Low_bound.apply(likelihood) forward: clamp(min=1e-6)
    out_ref[...] = jnp.maximum(like, jnp.float32(1e-6))
    # TODO(synk): Low_bound custom backward (gradient gating at the 1e-6 clamp)
    # is training-only and not implemented in this forward kernel.


def _pick_block_rows(rpb, n_images, target_rows, *, min_rows=512, min_total_steps=8):
    """Row-tile selection.

    Big lane-dense tiles amortize the ~0.35us/step overhead (HBM-bound v5e/v6e),
    but v7x's two TensorCores want >= ~8 balanced grid steps to share the work
    and ramp the 2-deep pipeline.  512-row tiles are already ~85% of the
    streaming roofline, so never shrink below that.  Keep target_rows <= ~2048:
    the double-buffered working set is then 8 MiB, safe on every generation
    (incl. v7x's 64 MiB VMEM).
    """
    blk = min(target_rows, rpb)
    steps = n_images * pl.cdiv(rpb, blk)
    if steps < min_total_steps and blk > min_rows:
        tiles_wanted = -(-min_total_steps // n_images)      # ceil(8 / N) row tiles
        blk = max(min_rows, -(-rpb // tiles_wanted))        # ceil(rpb / tiles)
        blk = min(blk, rpb)
    if blk < rpb:
        blk = max(8, (blk // 8) * 8)    # (8,128) layout constraint for partial tiles
    return blk


def distribution_for_entropy(x, p_dec, *, target_block_rows=2048):
    """x: [N, C, H, W] float32; p_dec: [N, 2C, H, W] float32 -> [N, C, H, W]."""
    N, C, H, W = x.shape
    assert p_dec.shape == (N, 2 * C, H, W), "p_dec must have 2*C channels"

    x = x.astype(jnp.float32)
    p_dec = p_dec.astype(jnp.float32)

    M = C * H * W
    if M % _LANES == 0:
        # Common path: pure (free) reshapes of contiguous NCHW data, zero copies.
        rpb = M // _LANES                                   # rows per image
        x3 = x.reshape(N, rpb, _LANES)
        p4 = p_dec.reshape(N, 2, rpb, _LANES)               # [:,0]=mean, [:,1]=scale
        padded = False
    else:
        # Rare fallback: pad flattened per-image dim to a lane multiple (one copy).
        rpb = pl.cdiv(M, _LANES)
        Mp = rpb * _LANES
        x3 = jnp.pad(x.reshape(N, M), ((0, 0), (0, Mp - M))).reshape(N, rpb, _LANES)
        p4 = jnp.pad(p_dec.reshape(N, 2, M),
                     ((0, 0), (0, 0), (0, Mp - M))).reshape(N, 2, rpb, _LANES)
        padded = True

    blk = _pick_block_rows(rpb, N, target_block_rows)
    grid_t = pl.cdiv(rpb, blk)

    x_spec = pl.BlockSpec((None, blk, _LANES), lambda n, t: (n, t, 0))
    p_spec = pl.BlockSpec((None, 2, blk, _LANES), lambda n, t: (n, 0, t, 0))
    out_spec = pl.BlockSpec((None, blk, _LANES), lambda n, t: (n, t, 0))

    total = N * rpb * _LANES
    out = pl.pallas_call(
        _entropy_kernel,
        out_shape=jax.ShapeDtypeStruct((N, rpb, _LANES), jnp.float32),
        grid_spec=pltpu.PrefetchScalarGridSpec(
            num_scalar_prefetch=0,
            grid=(N, grid_t),
            in_specs=[x_spec, p_spec],
            out_specs=out_spec,
        ),
        compiler_params=pltpu.CompilerParams(
            dimension_semantics=("parallel", "parallel"),
        ),
        cost_estimate=pl.CostEstimate(
            flops=64 * total,                 # ~VALU ops/elem (erf poly dominated)
            transcendentals=3 * total,        # 2x erf + 1x reciprocal
            bytes_accessed=16 * total,        # x + mean + scale reads, 1 write (f32)
        ),
    )(x3, p4)

    if not padded:
        return out.reshape(N, C, H, W)
    return out.reshape(N, rpb * _LANES)[:, :M].reshape(N, C, H, W)


def _reference(x, p_dec):
    """Pure-JAX reference (mirrors the PyTorch module)."""
    C = p_dec.shape[1] // 2
    mean = p_dec[:, :C]
    scale = p_dec[:, C:]
    scale = jnp.where(scale == 0.0, 1e-9, scale)
    cdf = lambda v: 0.5 * (1.0 + jax.lax.erf((v - mean) / (scale * math.sqrt(2.0))))
    like = jnp.abs(cdf(x + 0.5) - cdf(x - 0.5))
    return jnp.maximum(like, 1e-6)


if __name__ == "__main__":
    key = jax.random.PRNGKey(0)
    k_x, k_mean, k_scale = jax.random.split(key, 3)

    N, C, H, W = 2, 4, 16, 16
    # x plays the role of quantized symbols -> rounded values
    x = jnp.round(jax.random.normal(k_x, (N, C, H, W)) * 3.0).astype(jnp.float32)
    mean = jax.random.normal(k_mean, (N, C, H, W)).astype(jnp.float32)
    # positive scales (softplus-like); the kernel guards scale==0 internally anyway
    scale = jax.nn.softplus(jax.random.normal(k_scale, (N, C, H, W))).astype(jnp.float32)
    p_dec = jnp.concatenate([mean, scale], axis=1)          # [N, 2C, H, W]

    out = distribution_for_entropy(x, p_dec)
    out = jax.block_until_ready(out)

    ref = _reference(x, p_dec)
    assert out.shape == (N, C, H, W)
    assert jnp.allclose(out, ref, atol=1e-5, rtol=1e-5), "mismatch vs reference"

    print("KERNEL_OK")
</pallas_src>

<mosaic_0001>
module attributes {stable_mosaic.version = 11 : i64} {
  func.func @_entropy_kernel(%arg0: i32, %arg1: i32, %arg2: memref<1x8x128xf32, #tpu.memory_space<vmem>>, %arg3: memref<1x2x8x128xf32, #tpu.memory_space<vmem>>, %arg4: memref<1x8x128xf32, #tpu.memory_space<vmem>>) attributes {dimension_semantics = [#tpu.dimension_semantics<parallel>, #tpu.dimension_semantics<parallel>], iteration_bounds = array<i64: 2, 1>, scalar_prefetch = 0 : i64, scratch_operands = 0 : i64, tpu.core_type = #tpu.core_type<tc>, window_params = [{transform_indices = @transform_0, window_bounds = array<i64: 1, 8, 128>}, {transform_indices = @transform_1, window_bounds = array<i64: 1, 2, 8, 128>}, {transform_indices = @transform_2, window_bounds = array<i64: 1, 8, 128>}]} {
    %c0 = arith.constant 0 : index
    %c0_0 = arith.constant 0 : index
    %c0_1 = arith.constant 0 : index
    %0 = vector.load %arg2[%c0, %c0_0, %c0_1] : memref<1x8x128xf32, #tpu.memory_space<vmem>>, vector<1x8x128xf32>
    %1 = vector.shape_cast %0 : vector<1x8x128xf32> to vector<8x128xf32>
    %c0_2 = arith.constant 0 : index
    %c0_3 = arith.constant 0 : index
    %c0_4 = arith.constant 0 : index
    %c0_5 = arith.constant 0 : index
    %2 = vector.load %arg3[%c0_2, %c0_3, %c0_4, %c0_5] : memref<1x2x8x128xf32, #tpu.memory_space<vmem>>, vector<1x1x8x128xf32>
    %3 = vector.shape_cast %2 : vector<1x1x8x128xf32> to vector<8x128xf32>
    %c0_6 = arith.constant 0 : index
    %c1 = arith.constant 1 : index
    %c0_7 = arith.constant 0 : index
    %c0_8 = arith.constant 0 : index
    %4 = vector.load %arg3[%c0_6, %c1, %c0_7, %c0_8] : memref<1x2x8x128xf32, #tpu.memory_space<vmem>>, vector<1x1x8x128xf32>
    %5 = vector.shape_cast %4 : vector<1x1x8x128xf32> to vector<8x128xf32>
    %cst = arith.constant 0.000000e+00 : f32
    %6 = vector.broadcast %cst : f32 to vector<8x128xf32>
    %7 = arith.cmpf oeq, %5, %6 : vector<8x128xf32>
    %cst_9 = arith.constant 9.99999971E-10 : f32
    %8 = vector.broadcast %cst_9 : f32 to vector<8x128xf32>
    %9 = arith.select %7, %8, %5 : vector<8x128xi1>, vector<8x128xf32>
    %10 = math.absf %9 : vector<8x128xf32>
    %cst_10 = arith.constant 1.000000e-30 : f32
    %11 = vector.broadcast %cst_10 : f32 to vector<8x128xf32>
    %12 = arith.cmpf olt, %10, %11 : vector<8x128xf32>
    %cst_11 = arith.constant 0.000000e+00 : f32
    %13 = vector.broadcast %cst_11 : f32 to vector<8x128xf32>
    %14 = arith.cmpf olt, %9, %13 : vector<8x128xf32>
    %cst_12 = arith.constant -1.000000e-30 : f32
    %cst_13 = arith.constant 1.000000e-30 : f32
    %15 = vector.broadcast %cst_12 : f32 to vector<8x128xf32>
    %16 = vector.broadcast %cst_13 : f32 to vector<8x128xf32>
    %17 = arith.select %14, %15, %16 : vector<8x128xi1>, vector<8x128xf32>
    %18 = arith.select %12, %17, %9 : vector<8x128xi1>, vector<8x128xf32>
    %19 = tpu.reciprocal %18 {approx = true} : vector<8x128xf32> -> vector<8x128xf32>
    %20 = arith.mulf %18, %19 : vector<8x128xf32>
    %cst_14 = arith.constant 2.000000e+00 : f32
    %21 = vector.broadcast %cst_14 : f32 to vector<8x128xf32>
    %22 = arith.subf %21, %20 : vector<8x128xf32>
    %23 = arith.mulf %19, %22 : vector<8x128xf32>
    %cst_15 = arith.constant 0.707106769 : f32
    %24 = vector.broadcast %cst_15 : f32 to vector<8x128xf32>
    %25 = arith.mulf %23, %24 : vector<8x128xf32>
    %26 = arith.subf %1, %3 : vector<8x128xf32>
    %27 = arith.mulf %26, %25 : vector<8x128xf32>
    %cst_16 = arith.constant 5.000000e-01 : f32
    %28 = vector.broadcast %cst_16 : f32 to vector<8x128xf32>
    %29 = arith.mulf %28, %25 : vector<8x128xf32>
    %30 = arith.addf %27, %29 : vector<8x128xf32>
    %31 = math.erf %30 : vector<8x128xf32>
    %32 = arith.subf %27, %29 : vector<8x128xf32>
    %33 = math.erf %32 : vector<8x128xf32>
    %34 = arith.subf %31, %33 : vector<8x128xf32>
    %35 = math.absf %34 : vector<8x128xf32>
    %cst_17 = arith.constant 5.000000e-01 : f32
    %36 = vector.broadcast %cst_17 : f32 to vector<8x128xf32>
    %37 = arith.mulf %36, %35 : vector<8x128xf32>
    %cst_18 = arith.constant 9.99999997E-7 : f32
    %38 = vector.broadcast %cst_18 : f32 to vector<8x128xf32>
    %39 = arith.maximumf %37, %38 : vector<8x128xf32>
    %c0_19 = arith.constant 0 : index
    %c0_20 = arith.constant 0 : index
    %c0_21 = arith.constant 0 : index
    %40 = vector.load %arg4[%c0_19, %c0_20, %c0_21] : memref<1x8x128xf32, #tpu.memory_space<vmem>>, vector<1x8x128xf32>
    %41 = vector.shape_cast %40 : vector<1x8x128xf32> to vector<8x128xf32>
    %42 = vector.shape_cast %39 : vector<8x128xf32> to vector<1x8x128xf32>
    tpu.vector_store %arg4[%c0_19, %c0_20, %c0_21], %42 {strides = array<i32>} : memref<1x8x128xf32, #tpu.memory_space<vmem>>, vector<1x8x128xf32>,
    return
  }
  func.func @transform_0(%arg0: i32, %arg1: i32) -> (i32, i32, i32) {
    %c0_i32 = arith.constant 0 : i32
    %c0_i32_0 = arith.constant 0 : i32
    return %arg0, %arg1, %c0_i32 : i32, i32, i32
  }
  func.func @transform_1(%arg0: i32, %arg1: i32) -> (i32, i32, i32, i32) {
    %c0_i32 = arith.constant 0 : i32
    %c0_i32_0 = arith.constant 0 : i32
    %c0_i32_1 = arith.constant 0 : i32
    return %arg0, %c0_i32, %arg1, %c0_i32_0 : i32, i32, i32, i32
  }
  func.func @transform_2(%arg0: i32, %arg1: i32) -> (i32, i32, i32) {
    %c0_i32 = arith.constant 0 : i32
    %c0_i32_0 = arith.constant 0 : i32
    return %arg0, %arg1, %c0_i32 : i32, i32, i32
  }
}

</mosaic_0001>

<llo_original>
// kernel: tpu_custom_call.1
$region0: #{tpu_custom_call.1}
  #allocation0 [shape = 'u32[]', space=smem, size = 0x4, offset = 0x4, fixed_abs, tag = 'smem constant byte address 0x4 - core index']
  #allocation1 [shape = 'u32[144,128]{1,0:T(1,128)}', space=vmem, size = 0x12000, scoped, tag = 'internal scratch']
  %s0 = inlined_call_operand.hbm [shape: f32[2,8,128], index: 0, kind: input, shape index: {}]
  %s1 = inlined_call_operand.hbm [shape: f32[2,2,8,128], index: 1, kind: input, shape index: {}]
  %s2 = inlined_call_operand.hbm [shape: f32[2,8,128], index: 2, kind: output, shape index: {}]
  %s3 = sld [smem:[#allocation0]]
  $region49: #{tpu_custom_call.1} parent=0
    _
  %s5 = ssub.s32 1, %s3
  %s6 = scalar_select 0, %s5, %s3
  $region1: #{tpu_custom_call.1} parent=0
    #allocation2 [shape = 'u8[8192]{0}', space=vmem, size = 0x2000, scoped, tag = 'input window, operand 0']
    #allocation3 [shape = 's32[2]{0}', space=sflag, size = 0x8, scoped, tag = 'scoped memory for tpu_custom_call.1']
    #allocation4 [shape = 's32[2]{0}', space=sflag, size = 0x8, scoped, tag = 'scoped memory for tpu_custom_call.1']
    #allocation5 [shape = 'u8[16384]{0}', space=vmem, size = 0x4000, scoped, tag = 'input window, operand 1']
    #allocation6 [shape = 's32[2]{0}', space=sflag, size = 0x8, scoped, tag = 'scoped memory for tpu_custom_call.1']
    #allocation7 [shape = 'u8[8192]{0}', space=vmem, size = 0x2000, scoped, tag = 'output window, operand 0']
    %7 = vsyncpa [#allocation3], 0
    %s8 = scalar_lea.sflag [#allocation3], 1
    %9 = vsyncpa %s8, 0
    %10 = vsyncpa [#allocation6], 0
    %s11 = scalar_lea.sflag [#allocation6], 1
    %12 = vsyncpa %s11, 0
    %13 = vsyncpa [#allocation4], 0
    %s14 = scalar_lea.sflag [#allocation4], 1
    %15 = vsyncpa %s14, 0
    loop: start=0, step=1, limit=4
    $region2: #{tpu_custom_call.1} parent=1 // loop_pre_header
      _
    $region3: #{tpu_custom_call.1} parent=1 // loop_header
      %s17 = sphi 0, %s21
      %p18 = scmp.ge.s32.totalorder %s17, 4
      %s24 = sphi 0, %s36
      %s25 = sphi 0, %s32
      %s26 = sphi 0, %s24
      %s27 = sphi 0, %s25
      %s28 = sphi 0, %s26
      %s29 = sphi 0, %s27
      %s41 = sphi 0, %s43
      %s44 = sphi 0, %s41
      %s45 = sphi 0, %s44
      %s61 = sphi 0, %s45
      %s69 = sphi 0, %s71
      %s72 = sphi 0, %s69
      %s73 = sphi 0, %s72
      %s89 = sphi 0, %s73
      %s97 = sphi 0, %s99
      %s100 = sphi 0, %s97
      %s101 = sphi 0, %s100
      %s117 = sphi 0, %s101
    $region4: #{tpu_custom_call.1} parent=1 // loop_header_branch
      %20 = sbr.rel (%p18) target = $region8
    $region5: #{tpu_custom_call.1} parent=1 // loop_body
      %s22 = ssub.s32 %s17, 1
      %s23 = ssub.s32 %s17, 2
      %s30 = sadd.s32 1, %s25
      %p31 = scmp.ge.s32.totalorder %s30, 1
      %s32 = scalar_select %p31, 0, %s30
      %s33 = sadd.s32 1, %s24
      %s34 = scalar_select %p31, %s33, %s24
      %p35 = scmp.ge.s32.totalorder %s34, 2
      %s36 = scalar_select %p35, 0, %s34
      %s37 = ssub.s32 %s24, %s36
      %s38 = ssub.s32 %s25, %s32
      %s39 = sor.u32 %s37, %s38
      %p40 = scmp.eq.s32.totalorder %s39, 0
      %s42 = sadd.s32 %s41, 1
      %s43 = scalar_select %p40, %s41, %s42
      %p46 = pneg %p40
      %p47 = scmp.eq.s32.totalorder %s17, 1
      %p48 = por %p46, %p47
      %p49 = scmp.ne.s32.totalorder %s41, %s44
      %p50 = scmp.eq.s32.totalorder %s17, 0
      %p51 = por %p49, %p50
      %p52 = scmp.ne.s32.totalorder %s41, %s44
      %p53 = scmp.eq.s32.totalorder %s22, 1
      %p54 = por %p52, %p53
      %p55 = scmp.ne.s32.totalorder %s44, %s45
      %p56 = scmp.eq.s32.totalorder %s22, 0
      %p57 = por %p55, %p56
      %p58 = scmp.ne.s32.totalorder %s44, %s45
      %p59 = scmp.eq.s32.totalorder %s23, 1
      %p60 = por %p58, %p59
      %p62 = scmp.ne.s32.totalorder %s45, %s61
      %p63 = scmp.eq.s32.totalorder %s23, 0
      %p64 = por %p62, %p63
      %s65 = ssub.s32 %s24, %s36
      %s66 = ssub.s32 %s25, %s32
      %s67 = sor.u32 %s65, %s66
      %p68 = scmp.eq.s32.totalorder %s67, 0
      %s70 = sadd.s32 %s69, 1
      %s71 = scalar_select %p68, %s69, %s70
      %p74 = pneg %p68
      %p75 = scmp.eq.s32.totalorder %s17, 1
      %p76 = por %p74, %p75
      %p77 = scmp.ne.s32.totalorder %s69, %s72
      %p78 = scmp.eq.s32.totalorder %s17, 0
      %p79 = por %p77, %p78
      %p80 = scmp.ne.s32.totalorder %s69, %s72
      %p81 = scmp.eq.s32.totalorder %s22, 1
      %p82 = por %p80, %p81
      %p83 = scmp.ne.s32.totalorder %s72, %s73
      %p84 = scmp.eq.s32.totalorder %s22, 0
      %p85 = por %p83, %p84
      %p86 = scmp.ne.s32.totalorder %s72, %s73
      %p87 = scmp.eq.s32.totalorder %s23, 1
      %p88 = por %p86, %p87
      %p90 = scmp.ne.s32.totalorder %s73, %s89
      %p91 = scmp.eq.s32.totalorder %s23, 0
      %p92 = por %p90, %p91
      %s93 = ssub.s32 %s24, %s36
      %s94 = ssub.s32 %s25, %s32
      %s95 = sor.u32 %s93, %s94
      %p96 = scmp.eq.s32.totalorder %s95, 0
      %s98 = sadd.s32 %s97, 1
      %s99 = scalar_select %p96, %s97, %s98
      %p102 = pneg %p96
      %p103 = scmp.eq.s32.totalorder %s17, 1
      %p104 = por %p102, %p103
      %p105 = scmp.ne.s32.totalorder %s97, %s100
      %p106 = scmp.eq.s32.totalorder %s17, 0
      %p107 = por %p105, %p106
      %p108 = scmp.ne.s32.totalorder %s97, %s100
      %p109 = scmp.eq.s32.totalorder %s22, 1
      %p110 = por %p108, %p109
      %p111 = scmp.ne.s32.totalorder %s100, %s101
      %p112 = scmp.eq.s32.totalorder %s22, 0
      %p113 = por %p111, %p112
      %p114 = scmp.ne.s32.totalorder %s100, %s101
      %p115 = scmp.eq.s32.totalorder %s23, 1
      %p116 = por %p114, %p115
      %p118 = scmp.ne.s32.totalorder %s101, %s117
      %p119 = scmp.eq.s32.totalorder %s23, 0
      %p120 = por %p118, %p119
      %p121 = scmp.le.s32.totalorder 1, %s17
      %p122 = scmp.lt.s32.totalorder %s17, 3
      %p123 = pnand %p121, %p122
      %p124 = pneg %p123
      // Predicated region
      $region9: #{tpu_custom_call.1} parent=5 // pred_check
        _
      $region10: #{tpu_custom_call.1} parent=5 // pred_check_branch
        %126 = sbr.rel (%p123) target = $region12
      $region11: #{tpu_custom_call.1} parent=5 // pred_region
        %s127 = ssub.s32 %s17, 1
      $region12: #{tpu_custom_call.1} parent=5 // pred_fallthru
        _
      %p128 = scmp.lt.s32.totalorder %s17, 2
      // Predicated region
      $region13: #{tpu_custom_call.1} parent=5 // pred_check
        %p129 = pneg %p128
      $region14: #{tpu_custom_call.1} parent=5 // pred_check_branch
        %131 = sbr.rel (%p129) target = $region16
      $region15: #{tpu_custom_call.1} parent=5 // pred_region
        // Predicated region
        $region17: #{tpu_custom_call.1} parent=15 // pred_check
          %p132 = pneg %p51
        $region18: #{tpu_custom_call.1} parent=15 // pred_check_branch
          %134 = sbr.rel (%p132) target = $region20
        $region19: #{tpu_custom_call.1} parent=15 // pred_region
          %s135 = sand.u32 %s41, 1
          %s136 = scalar_lea.sflag [#allocation3], %s135
          %s137 = sand.u32 %s41, 1
          %s138 = smul.addr %s137, 8
          %s139 = scalar_lea.vmem [#allocation2], %s138
          %s141 = ssub.s32 128, 128
          %142 = vsyncadd %s136, %s141
          %s143 = sadd.s32 %s25, %s24
          %s144 = smul.addr %s143, 128
          %s145 = scalar_lea.hbm %s0, %s144
          %s147 = sshll.u32 %s139, 4
          %s148 = int_to_ptr.vmem [resolvable:$true] %s147
          %150 = dma.hbm_to_vmem [thread:$0]  %s145, 128, %s148, %s136
        $region20: #{tpu_custom_call.1} parent=15 // pred_fallthru
          _
        // Predicated region
        $region21: #{tpu_custom_call.1} parent=15 // pred_check
          %p151 = pneg %p79
        $region22: #{tpu_custom_call.1} parent=15 // pred_check_branch
          %153 = sbr.rel (%p151) target = $region24
        $region23: #{tpu_custom_call.1} parent=15 // pred_region
          %s154 = sand.u32 %s69, 1
          %s155 = scalar_lea.sflag [#allocation6], %s154
          %s156 = sand.u32 %s69, 1
          %s157 = smul.addr %s156, 16
          %s158 = scalar_lea.vmem [#allocation5], %s157
          %s160 = ssub.s32 256, 256
          %161 = vsyncadd %s155, %s160
          %s162 = smul.addr %s24, 2
          %s163 = sadd.s32 %s25, %s162
          %s164 = smul.addr %s163, 128
          %s165 = scalar_lea.hbm %s1, %s164
          %s166 = sshll.u32 %s158, 4
          %s167 = int_to_ptr.vmem [resolvable:$true] %s166
          %172 = dma.hbm_to_vmem [thread:$0]  %s165, 256, %s167, %s155, 128, 128, 8
        $region24: #{tpu_custom_call.1} parent=15 // pred_fallthru
          _
      $region16: #{tpu_custom_call.1} parent=5 // pred_fallthru
        _
      %p173 = scmp.le.s32.totalorder 1, %s17
      %p174 = scmp.lt.s32.totalorder %s17, 3
      %p175 = pnand %p173, %p174
      %p176 = pneg %p175
      // Predicated region
      $region25: #{tpu_custom_call.1} parent=5 // pred_check
        _
      $region26: #{tpu_custom_call.1} parent=5 // pred_check_branch
        %178 = sbr.rel (%p175) target = $region28
      $region27: #{tpu_custom_call.1} parent=5 // pred_region
        %s179 = ssub.s32 %s17, 1
        %s180 = sand.u32 %s44, 1
        %s181 = scalar_lea.sflag [#allocation3], %s180
        %s182 = sand.u32 %s44, 1
        %s183 = smul.addr %s182, 8
        %s184 = scalar_lea.vmem [#allocation2], %s183
        // Predicated region
        $region29: #{tpu_custom_call.1} parent=27 // pred_check
          %p185 = pneg %p57
        $region30: #{tpu_custom_call.1} parent=27 // pred_check_branch
          %187 = sbr.rel (%p185) target = $region32
        $region31: #{tpu_custom_call.1} parent=27 // pred_region
          %188 = dma.done %s181, 128
        $region32: #{tpu_custom_call.1} parent=27 // pred_fallthru
          _
        %s189 = sand.u32 %s72, 1
        %s190 = scalar_lea.sflag [#allocation6], %s189
        %s191 = sand.u32 %s72, 1
        %s192 = smul.addr %s191, 16
        %s193 = scalar_lea.vmem [#allocation5], %s192
        // Predicated region
        $region33: #{tpu_custom_call.1} parent=27 // pred_check
          %p194 = pneg %p85
        $region34: #{tpu_custom_call.1} parent=27 // pred_check_branch
          %196 = sbr.rel (%p194) target = $region36
        $region35: #{tpu_custom_call.1} parent=27 // pred_region
          %197 = dma.done %s190, 256
        $region36: #{tpu_custom_call.1} parent=27 // pred_fallthru
          _
        %s198 = sand.u32 %s44, 1
        %s199 = scalar_lea.sflag [#allocation3], %s198
        %s200 = sand.u32 %s44, 1
        %s201 = smul.addr %s200, 8
        %s202 = scalar_lea.vmem [#allocation2], %s201
        %p203 = pneg %p57
        %p204 = pneg %p54
        %s205 = sand.u32 %s72, 1
        %s206 = scalar_lea.sflag [#allocation6], %s205
        %s207 = sand.u32 %s72, 1
        %s208 = smul.addr %s207, 16
        %s209 = scalar_lea.vmem [#allocation5], %s208
        %p210 = pneg %p85
        %p211 = pneg %p82
        %p212 = pneg %p113
        %p213 = pneg %p110
        %s214 = sand.u32 %s100, 1
        %s215 = scalar_lea.sflag [#allocation4], %s214
        %s216 = sand.u32 %s100, 1
        %s217 = smul.addr %s216, 8
        %s218 = scalar_lea.vmem [#allocation7], %s217
        %v219 = vld [vmem:[%s184] sm:$0xff]
        %v220 = vld [vmem:[%s193] sm:$0xff]
        %s221 = scalar_lea.vmem %s193, 8 [#allocation5]
        %v222 = vld [vmem:[%s221] sm:$0xff]
        %vm223 = vcmp.eq.f32.partialorder %v222, 0.0
        %v224 = vsel %vm223, 1e-09, %v222
        %v225 = vand.u32 2147483647, %v224
        %vm226 = vcmp.lt.f32.partialorder %v225, 1e-30
        %vm227 = vcmp.lt.f32.partialorder %v224, 0.0
        %v228 = vsel %vm227, -1e-30, 1e-30
        %v229 = vsel %vm226, %v228, %v224
        %v230 = vrcp.pop %v229
        %v231 = vmul.f32 %v229, %v230
        %v232 = vsub.f32 2.0, %v231
        %v233 = vmul.f32 %v230, %v232
        %v234 = vmul.f32 %v233, 0.70710677
        %v235 = vsub.f32 %v219, %v220
        %v236 = vmul.f32 %v235, %v234
        %v237 = vmul.f32 %v234, 0.5
        %v238 = vadd.f32 %v236, %v237
        %v239 = verf.f32.pop %v238
        %v240 = vsub.f32 %v236, %v237
        %v241 = verf.f32.pop %v240
        %v242 = vsub.f32 %v239, %v241
        %v243 = vand.u32 2147483647, %v242
        %v244 = vmul.f32 %v243, 0.5
        %v245 = vmax.f32 %v244, 1e-06
        %246 = vst [vmem:[%s218] sm:$0xff] %v245
        %s247 = sand.u32 %s100, 1
        %s248 = scalar_lea.sflag [#allocation4], %s247
        %s249 = sand.u32 %s100, 1
        %s250 = smul.addr %s249, 8
        %s251 = scalar_lea.vmem [#allocation7], %s250
        // Predicated region
        $region37: #{tpu_custom_call.1} parent=27 // pred_check
          %p252 = pneg %p110
        $region38: #{tpu_custom_call.1} parent=27 // pred_check_branch
          %254 = sbr.rel (%p252) target = $region40
        $region39: #{tpu_custom_call.1} parent=27 // pred_region
          %s256 = ssub.s32 128, 128
          %257 = vsyncadd %s248, %s256
          %s258 = sadd.s32 %s27, %s26
          %s259 = smul.addr %s258, 128
          %s260 = scalar_lea.hbm %s2, %s259
          %s262 = sshll.u32 %s251, 4
          %s263 = int_to_ptr.vmem [resolvable:$true] %s262
          %265 = dma.vmem_to_hbm [thread:$0]  %s263, 128, %s260, %s248
        $region40: #{tpu_custom_call.1} parent=27 // pred_fallthru
          _
      $region28: #{tpu_custom_call.1} parent=5 // pred_fallthru
        _
      %p266 = scmp.le.s32.totalorder 2, %s17
      // Predicated region
      $region41: #{tpu_custom_call.1} parent=5 // pred_check
        %p267 = pneg %p266
      $region42: #{tpu_custom_call.1} parent=5 // pred_check_branch
        %269 = sbr.rel (%p267) target = $region44
      $region43: #{tpu_custom_call.1} parent=5 // pred_region
        %s270 = ssub.s32 %s17, 2
        // Predicated region
        $region45: #{tpu_custom_call.1} parent=43 // pred_check
          %p271 = pneg %p116
        $region46: #{tpu_custom_call.1} parent=43 // pred_check_branch
          %273 = sbr.rel (%p271) target = $region48
        $region47: #{tpu_custom_call.1} parent=43 // pred_region
          %s274 = sand.u32 %s101, 1
          %s275 = scalar_lea.sflag [#allocation4], %s274
          %s276 = sand.u32 %s101, 1
          %s277 = smul.addr %s276, 8
          %s278 = scalar_lea.vmem [#allocation7], %s277
          %279 = dma.done %s275, 128
        $region48: #{tpu_custom_call.1} parent=43 // pred_fallthru
          _
      $region44: #{tpu_custom_call.1} parent=5 // pred_fallthru
        _
    $region6: #{tpu_custom_call.1} parent=1 // loop_footer
      %s21 = sadd.s32 1, %s17
    $region7: #{tpu_custom_call.1} parent=1 // loop_footer_branch
      %16 = sbr.rel target = $region3
    $region8: #{tpu_custom_call.1} parent=1 // loop_exit
      _
    %280 = vsyncpa [#allocation3], 1
    %s281 = scalar_lea.sflag [#allocation3], 1
    %282 = vsyncpa %s281, 1
    %283 = vsyncpa [#allocation6], 1
    %s284 = scalar_lea.sflag [#allocation6], 1
    %285 = vsyncpa %s284, 1
    %286 = vsyncpa [#allocation4], 1
    %s287 = scalar_lea.sflag [#allocation4], 1
    %288 = vsyncpa %s287, 1

</llo_original>
